<compile_context>
chip_gen: v7x
topology: tpu7x:2x2x1
jax: 0.10.0
libtpu: 0.0.40
codegen_flags: <defaults>
</compile_context>

<pallas_src>
import functools

import jax
import jax.numpy as jnp
from jax.experimental import pallas as pl
from jax.experimental.pallas import tpu as pltpu


def _fused_conv1x1_tanh_kernel(x_ref, w_ref, b_ref, o_ref):
    # x_ref: (Bt, C_in, M), w_ref: (C_out, C_in), b_ref: (C_out, 1),
    # o_ref: (Bt, C_out, M).  Bt is a compile-time block dim -> static unroll.
    w = w_ref[...]
    b = b_ref[...]
    bt = x_ref.shape[0]
    for i in range(bt):
        y = jnp.dot(w, x_ref[i], preferred_element_type=jnp.float32)
        o_ref[i] = jnp.tanh(y + b).astype(o_ref.dtype)


def fuse_params(w1, b1, w2, b2, *, param_dtype=jnp.float32):
    """One-time (hoisted) parameter fusion: x@W1 + b1 + x@W2 + b2 == x@(W1+W2) + (b1+b2)."""
    c_out = w1.shape[0]
    w = (w1.astype(jnp.float32) + w2.astype(jnp.float32)).astype(param_dtype)
    b = (b1.astype(jnp.float32) + b2.astype(jnp.float32)).reshape(c_out, 1)
    return w, b  # b kept in f32; bias-add + tanh are done in f32 in-kernel.


def _pick_batch_tile(n, c_in, c_out, m, itemsize,
                     vmem_budget_bytes=24 * 1024 * 1024):
    """Largest divisor of n whose double-buffered per-step footprint fits the budget."""
    per_b = 2 * (c_in + c_out) * m * itemsize  # in + out tiles, double-buffered
    cap = max(1, int(vmem_budget_bytes // max(per_b, 1)))
    cap = min(cap, 16, n)
    for bt in range(cap, 0, -1):
        if n % bt == 0:
            return bt
    return 1


@functools.partial(jax.jit, static_argnames=("out_dtype",))
def model_tanh_forward_fused(x_nchw, w, b, *, out_dtype=jnp.float32):
    """x_nchw: (N, C_in, H, W); w: (C_out, C_in) fused weight; b: (C_out, 1) fused f32 bias.
    Returns tanh(conv1(x) + conv2(x)) as (N, C_out, H, W)."""
    N, C_in, H, W = x_nchw.shape
    C_out = w.shape[0]
    M = H * W

    # NCHW is already (N, C_in, H*W) contiguously -> pure reshape, no transpose.
    x_flat = x_nchw.reshape(N, C_in, M)

    bt = _pick_batch_tile(N, C_in, C_out, M, x_flat.dtype.itemsize)
    grid = (N // bt,)

    cost = pl.CostEstimate(
        flops=2 * N * C_out * C_in * M,
        transcendentals=N * C_out * M,
        bytes_accessed=(x_flat.size * x_flat.dtype.itemsize
                        + w.size * w.dtype.itemsize
                        + b.size * b.dtype.itemsize
                        + N * C_out * M * jnp.dtype(out_dtype).itemsize),
    )

    out = pl.pallas_call(
        _fused_conv1x1_tanh_kernel,
        out_shape=jax.ShapeDtypeStruct((N, C_out, M), out_dtype),
        grid_spec=pltpu.PrefetchScalarGridSpec(
            num_scalar_prefetch=0,
            grid=grid,
            in_specs=[
                pl.BlockSpec((bt, C_in, M), lambda n: (n, 0, 0)),
                pl.BlockSpec((C_out, C_in), lambda n: (0, 0)),  # resident across steps
                pl.BlockSpec((C_out, 1), lambda n: (0, 0)),     # resident across steps
            ],
            out_specs=pl.BlockSpec((bt, C_out, M), lambda n: (n, 0, 0)),
        ),
        compiler_params=pltpu.CompilerParams(
            dimension_semantics=("parallel",),  # shards batch steps across TCs on v7x
        ),
        cost_estimate=cost,
    )(x_flat, w, b)

    # (N, C_out, H*W) -> (N, C_out, H, W): again a pure reshape.
    return out.reshape(N, C_out, H, W)


def model_tanh_forward(x_nchw, w1, b1, w2, b2):
    """Convenience path matching the original module signature. For hot loops,
    call fuse_params() once and use model_tanh_forward_fused() directly."""
    w, b = fuse_params(w1, b1, w2, b2)
    return model_tanh_forward_fused(x_nchw, w, b)


if __name__ == "__main__":
    key = jax.random.PRNGKey(0)
    k_x, k_w1, k_b1, k_w2, k_b2, k_xb = jax.random.split(key, 6)

    # Channel sizes fixed by the module (Conv2d(128, 64, 1)); spatial matches the spec.
    N, C_in, H, W = 1, 128, 28, 28
    C_out = 64

    x = jax.random.normal(k_x, (N, C_in, H, W), dtype=jnp.float32)

    # Deterministic parameter init (mimicking PyTorch Conv2d uniform bounds for 1x1 conv).
    bound = 1.0 / (C_in ** 0.5)
    w1 = jax.random.uniform(k_w1, (C_out, C_in), jnp.float32, -bound, bound)
    b1 = jax.random.uniform(k_b1, (C_out,), jnp.float32, -bound, bound)
    w2 = jax.random.uniform(k_w2, (C_out, C_in), jnp.float32, -bound, bound)
    b2 = jax.random.uniform(k_b2, (C_out,), jnp.float32, -bound, bound)

    def reference(xi):
        xf = xi.astype(jnp.float32).reshape(xi.shape[0], C_in, -1)
        return jnp.tanh(
            jnp.einsum("oc,ncm->nom", w1, xf) + b1[None, :, None]
            + jnp.einsum("oc,ncm->nom", w2, xf) + b2[None, :, None]
        ).reshape(xi.shape[0], C_out, H, W)

    # ---- f32 path, hoisted fusion (the spec case: N=1) ----
    w_f32, b_col = fuse_params(w1, b1, w2, b2)
    out = model_tanh_forward_fused(x, w_f32, b_col)
    jax.block_until_ready(out)
    assert out.shape == (N, C_out, H, W)
    assert jnp.allclose(out, reference(x), atol=1e-5, rtol=1e-5)

    # ---- f32 path, N>1 exercises the batch-tiled grid step (Bt>1) ----
    Nb = 4
    xb = jax.random.normal(k_xb, (Nb, C_in, H, W), dtype=jnp.float32)
    out_b = model_tanh_forward_fused(xb, w_f32, b_col)
    jax.block_until_ready(out_b)
    assert out_b.shape == (Nb, C_out, H, W)
    assert jnp.allclose(out_b, reference(xb), atol=1e-5, rtol=1e-5)

    # ---- optional bf16-I/O path (halves dominant HBM traffic); math stays f32 ----
    w_bf16, _ = fuse_params(w1, b1, w2, b2, param_dtype=jnp.bfloat16)
    out_bf16 = model_tanh_forward_fused(x.astype(jnp.bfloat16), w_bf16, b_col)
    jax.block_until_ready(out_bf16)
    assert jnp.allclose(out_bf16, reference(x), atol=2e-2, rtol=2e-2)

    print("KERNEL_OK")
</pallas_src>

<mosaic_0001>
module attributes {stable_mosaic.version = 11 : i64} {
  func.func @_fused_conv1x1_tanh_kernel(%arg0: i32, %arg1: memref<1x128x784xf32, #tpu.memory_space<vmem>>, %arg2: memref<64x128xf32, #tpu.memory_space<vmem>>, %arg3: memref<64x1xf32, #tpu.memory_space<vmem>>, %arg4: memref<1x64x784xf32, #tpu.memory_space<vmem>>) attributes {dimension_semantics = [#tpu.dimension_semantics<parallel>], iteration_bounds = array<i64: 1>, scalar_prefetch = 0 : i64, scratch_operands = 0 : i64, tpu.core_type = #tpu.core_type<tc>, window_params = [{transform_indices = @transform_0, window_bounds = array<i64: 1, 128, 784>}, {pipeline_mode = #tpu.pipeline_mode<synchronous>, transform_indices = @transform_1, window_bounds = array<i64: 64, 128>}, {pipeline_mode = #tpu.pipeline_mode<synchronous>, transform_indices = @transform_2, window_bounds = array<i64: 64, 1>}, {transform_indices = @transform_3, window_bounds = array<i64: 1, 64, 784>}]} {
    %c0 = arith.constant 0 : index
    %c0_0 = arith.constant 0 : index
    %0 = vector.load %arg2[%c0, %c0_0] : memref<64x128xf32, #tpu.memory_space<vmem>>, vector<64x128xf32>
    %c0_1 = arith.constant 0 : index
    %c0_2 = arith.constant 0 : index
    %1 = vector.load %arg3[%c0_1, %c0_2] : memref<64x1xf32, #tpu.memory_space<vmem>>, vector<64x1xf32>
    %c0_3 = arith.constant 0 : index
    %c0_4 = arith.constant 0 : index
    %c0_5 = arith.constant 0 : index
    %2 = vector.load %arg1[%c0_3, %c0_4, %c0_5] : memref<1x128x784xf32, #tpu.memory_space<vmem>>, vector<1x128x784xf32>
    %3 = vector.shape_cast %2 : vector<1x128x784xf32> to vector<128x784xf32>
    %cst = arith.constant dense<0.000000e+00> : vector<64x784xf32>
    %4 = tpu.matmul %0, %3, %cst {dimension_numbers = #tpu.dot_dimension_numbers<[1], [0], [0], [1], [0, 0, 1, 1], [], []>} : vector<64x128xf32>, vector<128x784xf32>, vector<64x784xf32> -> vector<64x784xf32>
    %5 = vector.broadcast %1 : vector<64x1xf32> to vector<64x784xf32>
    %6 = arith.addf %4, %5 : vector<64x784xf32>
    %7 = math.tanh %6 : vector<64x784xf32>
    %c0_6 = arith.constant 0 : index
    %c0_7 = arith.constant 0 : index
    %c0_8 = arith.constant 0 : index
    %8 = vector.load %arg4[%c0_6, %c0_7, %c0_8] : memref<1x64x784xf32, #tpu.memory_space<vmem>>, vector<1x64x784xf32>
    %9 = vector.shape_cast %8 : vector<1x64x784xf32> to vector<64x784xf32>
    %10 = vector.shape_cast %7 : vector<64x784xf32> to vector<1x64x784xf32>
    tpu.vector_store %arg4[%c0_6, %c0_7, %c0_8], %10 {strides = array<i32>} : memref<1x64x784xf32, #tpu.memory_space<vmem>>, vector<1x64x784xf32>,
    return
  }
  func.func @transform_0(%arg0: i32) -> (i32, i32, i32) {
    %c0_i32 = arith.constant 0 : i32
    %c0_i32_0 = arith.constant 0 : i32
    %c0_i32_1 = arith.constant 0 : i32
    return %arg0, %c0_i32, %c0_i32_0 : i32, i32, i32
  }
  func.func @transform_1(%arg0: i32) -> (i32, i32) {
    %c0_i32 = arith.constant 0 : i32
    %c0_i32_0 = arith.constant 0 : i32
    %c0_i32_1 = arith.constant 0 : i32
    return %c0_i32, %c0_i32_0 : i32, i32
  }
  func.func @transform_2(%arg0: i32) -> (i32, i32) {
    %c0_i32 = arith.constant 0 : i32
    %c0_i32_0 = arith.constant 0 : i32
    %c0_i32_1 = arith.constant 0 : i32
    return %c0_i32, %c0_i32_0 : i32, i32
  }
  func.func @transform_3(%arg0: i32) -> (i32, i32, i32) {
    %c0_i32 = arith.constant 0 : i32
    %c0_i32_0 = arith.constant 0 : i32
    %c0_i32_1 = arith.constant 0 : i32
    return %arg0, %c0_i32, %c0_i32_0 : i32, i32, i32
  }
}

</mosaic_0001>

<llo_original>
// kernel: model_tanh_forward_fused.1
$region0: #{model_tanh_forward_fused.1}
  #allocation0 [shape = 'u32[]', space=smem, size = 0x4, offset = 0x4, fixed_abs, tag = 'smem constant byte address 0x4 - core index']
  #allocation1 [shape = 'u32[144,128]{1,0:T(1,128)}', space=vmem, size = 0x12000, scoped, tag = 'internal scratch']
  %s0 = inlined_call_operand.vmem [shape: f32[1,128,784], index: 0, kind: input, shape index: {}]
  %s1 = inlined_call_operand.vmem [shape: f32[64,128], index: 1, kind: input, shape index: {}]
  %s2 = inlined_call_operand.vmem [shape: f32[64,1], index: 2, kind: input, shape index: {}]
  %s3 = inlined_call_operand.vmem [shape: f32[1,64,784], index: 3, kind: output, shape index: {}]
  %s4 = sld [smem:[#allocation0]]
  $region22: #{model_tanh_forward_fused.1} parent=0
    _
  %s6 = ssub.s32 1, %s4
  %s7 = scalar_select 0, %s6, %s4
  // Predicated region
  $region2: #{model_tanh_forward_fused.1} parent=0 // pred_check
    _
  $region3: #{model_tanh_forward_fused.1} parent=0 // pred_check_branch
    %9 = sbr.rel (0) target = $region5
  $region4: #{model_tanh_forward_fused.1} parent=0 // pred_region
    _
  $region5: #{model_tanh_forward_fused.1} parent=0 // pred_fallthru
    _
  // Predicated region
  $region6: #{model_tanh_forward_fused.1} parent=0 // pred_check
    _
  $region7: #{model_tanh_forward_fused.1} parent=0 // pred_check_branch
    %11 = sbr.rel (0) target = $region9
  $region8: #{model_tanh_forward_fused.1} parent=0 // pred_region
    _
  $region9: #{model_tanh_forward_fused.1} parent=0 // pred_fallthru
    _
  // Predicated region
  $region10: #{model_tanh_forward_fused.1} parent=0 // pred_check
    _
  $region11: #{model_tanh_forward_fused.1} parent=0 // pred_check_branch
    %13 = sbr.rel (0) target = $region13
  $region12: #{model_tanh_forward_fused.1} parent=0 // pred_region
    _
  $region13: #{model_tanh_forward_fused.1} parent=0 // pred_fallthru
    _
  %v14 = vld [vmem:[%s1] sm:$0xff]
  %v15 = vld [vmem:[%s1 + $0x8] sm:$0xff]
  %v16 = vld [vmem:[%s1 + $0x10] sm:$0xff]
  %v17 = vld [vmem:[%s1 + $0x18] sm:$0xff]
  %v18 = vld [vmem:[%s1 + $0x20] sm:$0xff]
  %v19 = vld [vmem:[%s1 + $0x28] sm:$0xff]
  %v20 = vld [vmem:[%s1 + $0x30] sm:$0xff]
  %v21 = vld [vmem:[%s1 + $0x38] sm:$0xff]
  %v22 = vld [vmem:[%s2] sm:$0xff]
  %v23 = vld [vmem:[%s2 + $0x8] sm:$0xff]
  %v24 = vld [vmem:[%s2 + $0x10] sm:$0xff]
  %v25 = vld [vmem:[%s2 + $0x18] sm:$0xff]
  %v26 = vld [vmem:[%s2 + $0x20] sm:$0xff]
  %v27 = vld [vmem:[%s2 + $0x28] sm:$0xff]
  %v28 = vld [vmem:[%s2 + $0x30] sm:$0xff]
  %v29 = vld [vmem:[%s2 + $0x38] sm:$0xff]
  %v30 = vld [vmem:[%s0] sm:$0xff]
  %v31 = vld [vmem:[%s0 + $0x8] sm:$0xff]
  %v32 = vld [vmem:[%s0 + $0x10] sm:$0xff]
  %v33 = vld [vmem:[%s0 + $0x18] sm:$0xff]
  %v34 = vld [vmem:[%s0 + $0x20] sm:$0xff]
  %v35 = vld [vmem:[%s0 + $0x28] sm:$0xff]
  %v36 = vld [vmem:[%s0 + $0x30] sm:$0xff]
  %v37 = vld [vmem:[%s0 + $0x38] sm:$0xff]
  %v38 = vld [vmem:[%s0 + $0x40] sm:$0xff]
  %v39 = vld [vmem:[%s0 + $0x48] sm:$0xff]
  %v40 = vld [vmem:[%s0 + $0x50] sm:$0xff]
  %v41 = vld [vmem:[%s0 + $0x58] sm:$0xff]
  %v42 = vld [vmem:[%s0 + $0x60] sm:$0xff]
  %v43 = vld [vmem:[%s0 + $0x68] sm:$0xff]
  %v44 = vld [vmem:[%s0 + $0x70] sm:$0xff]
  %v45 = vld [vmem:[%s0 + $0x78] sm:$0xff]
  %v46 = vld [vmem:[%s0 + $0x80] sm:$0xff]
  %v47 = vld [vmem:[%s0 + $0x88] sm:$0xff]
  %v48 = vld [vmem:[%s0 + $0x90] sm:$0xff]
  %v49 = vld [vmem:[%s0 + $0x98] sm:$0xff]
  %v50 = vld [vmem:[%s0 + $0xa0] sm:$0xff]
  %v51 = vld [vmem:[%s0 + $0xa8] sm:$0xff]
  %v52 = vld [vmem:[%s0 + $0xb0] sm:$0xff]
  %v53 = vld [vmem:[%s0 + $0xb8] sm:$0xff]
  %v54 = vld [vmem:[%s0 + $0xc0] sm:$0xff]
  %v55 = vld [vmem:[%s0 + $0xc8] sm:$0xff]
  %v56 = vld [vmem:[%s0 + $0xd0] sm:$0xff]
  %v57 = vld [vmem:[%s0 + $0xd8] sm:$0xff]
  %v58 = vld [vmem:[%s0 + $0xe0] sm:$0xff]
  %v59 = vld [vmem:[%s0 + $0xe8] sm:$0xff]
  %v60 = vld [vmem:[%s0 + $0xf0] sm:$0xff]
  %v61 = vld [vmem:[%s0 + $0xf8] sm:$0xff]
  %v62 = vld [vmem:[%s0 + $0x100] sm:$0xff]
  %v63 = vld [vmem:[%s0 + $0x108] sm:$0xff]
  %v64 = vld [vmem:[%s0 + $0x110] sm:$0xff]
  %v65 = vld [vmem:[%s0 + $0x118] sm:$0xff]
  %v66 = vld [vmem:[%s0 + $0x120] sm:$0xff]
  %v67 = vld [vmem:[%s0 + $0x128] sm:$0xff]
  %v68 = vld [vmem:[%s0 + $0x130] sm:$0xff]
  %v69 = vld [vmem:[%s0 + $0x138] sm:$0xff]
  %v70 = vld [vmem:[%s0 + $0x140] sm:$0xff]
  %v71 = vld [vmem:[%s0 + $0x148] sm:$0xff]
  %v72 = vld [vmem:[%s0 + $0x150] sm:$0xff]
  %v73 = vld [vmem:[%s0 + $0x158] sm:$0xff]
  %v74 = vld [vmem:[%s0 + $0x160] sm:$0xff]
  %v75 = vld [vmem:[%s0 + $0x168] sm:$0xff]
  %v76 = vld [vmem:[%s0 + $0x170] sm:$0xff]
  %v77 = vld [vmem:[%s0 + $0x178] sm:$0xff]
  %v78 = vld [vmem:[%s0 + $0x180] sm:$0xff]
  %v79 = vld [vmem:[%s0 + $0x188] sm:$0xff]
  %v80 = vld [vmem:[%s0 + $0x190] sm:$0xff]
  %v81 = vld [vmem:[%s0 + $0x198] sm:$0xff]
  %v82 = vld [vmem:[%s0 + $0x1a0] sm:$0xff]
  %v83 = vld [vmem:[%s0 + $0x1a8] sm:$0xff]
  %v84 = vld [vmem:[%s0 + $0x1b0] sm:$0xff]
  %v85 = vld [vmem:[%s0 + $0x1b8] sm:$0xff]
  %v86 = vld [vmem:[%s0 + $0x1c0] sm:$0xff]
  %v87 = vld [vmem:[%s0 + $0x1c8] sm:$0xff]
  %v88 = vld [vmem:[%s0 + $0x1d0] sm:$0xff]
  %v89 = vld [vmem:[%s0 + $0x1d8] sm:$0xff]
  %v90 = vld [vmem:[%s0 + $0x1e0] sm:$0xff]
  %v91 = vld [vmem:[%s0 + $0x1e8] sm:$0xff]
  %v92 = vld [vmem:[%s0 + $0x1f0] sm:$0xff]
  %v93 = vld [vmem:[%s0 + $0x1f8] sm:$0xff]
  %v94 = vld [vmem:[%s0 + $0x200] sm:$0xff]
  %v95 = vld [vmem:[%s0 + $0x208] sm:$0xff]
  %v96 = vld [vmem:[%s0 + $0x210] sm:$0xff]
  %v97 = vld [vmem:[%s0 + $0x218] sm:$0xff]
  %v98 = vld [vmem:[%s0 + $0x220] sm:$0xff]
  %v99 = vld [vmem:[%s0 + $0x228] sm:$0xff]
  %v100 = vld [vmem:[%s0 + $0x230] sm:$0xff]
  %v101 = vld [vmem:[%s0 + $0x238] sm:$0xff]
  %v102 = vld [vmem:[%s0 + $0x240] sm:$0xff]
  %v103 = vld [vmem:[%s0 + $0x248] sm:$0xff]
  %v104 = vld [vmem:[%s0 + $0x250] sm:$0xff]
  %v105 = vld [vmem:[%s0 + $0x258] sm:$0xff]
  %v106 = vld [vmem:[%s0 + $0x260] sm:$0xff]
  %v107 = vld [vmem:[%s0 + $0x268] sm:$0xff]
  %v108 = vld [vmem:[%s0 + $0x270] sm:$0xff]
  %v109 = vld [vmem:[%s0 + $0x278] sm:$0xff]
  %v110 = vld [vmem:[%s0 + $0x280] sm:$0xff]
  %v111 = vld [vmem:[%s0 + $0x288] sm:$0xff]
  %v112 = vld [vmem:[%s0 + $0x290] sm:$0xff]
  %v113 = vld [vmem:[%s0 + $0x298] sm:$0xff]
  %v114 = vld [vmem:[%s0 + $0x2a0] sm:$0xff]
  %v115 = vld [vmem:[%s0 + $0x2a8] sm:$0xff]
  %v116 = vld [vmem:[%s0 + $0x2b0] sm:$0xff]
  %v117 = vld [vmem:[%s0 + $0x2b8] sm:$0xff]
  %v118 = vld [vmem:[%s0 + $0x2c0] sm:$0xff]
  %v119 = vld [vmem:[%s0 + $0x2c8] sm:$0xff]
  %v120 = vld [vmem:[%s0 + $0x2d0] sm:$0xff]
  %v121 = vld [vmem:[%s0 + $0x2d8] sm:$0xff]
  %v122 = vld [vmem:[%s0 + $0x2e0] sm:$0xff]
  %v123 = vld [vmem:[%s0 + $0x2e8] sm:$0xff]
  %v124 = vld [vmem:[%s0 + $0x2f0] sm:$0xff]
  %v125 = vld [vmem:[%s0 + $0x2f8] sm:$0xff]
  %v126 = vld [vmem:[%s0 + $0x300] sm:$0xff]
  %v127 = vld [vmem:[%s0 + $0x308] sm:$0xff]
  %v128 = vld [vmem:[%s0 + $0x310] sm:$0xff]
  %v129 = vld [vmem:[%s0 + $0x318] sm:$0xff]
  %v130 = vld [vmem:[%s0 + $0x320] sm:$0xff]
  %v131 = vld [vmem:[%s0 + $0x328] sm:$0xff]
  %v132 = vld [vmem:[%s0 + $0x330] sm:$0xff]
  %v133 = vld [vmem:[%s0 + $0x338] sm:$0xff]
  %v134 = vld [vmem:[%s0 + $0x340] sm:$0xff]
  %v135 = vld [vmem:[%s0 + $0x348] sm:$0xff]
  %v136 = vld [vmem:[%s0 + $0x350] sm:$0xff]
  %v137 = vld [vmem:[%s0 + $0x358] sm:$0xff]
  %v138 = vld [vmem:[%s0 + $0x360] sm:$0xff]
  %v139 = vld [vmem:[%s0 + $0x368] sm:$0xff]
  %v140 = vld [vmem:[%s0 + $0x370] sm:$0xff]
  %v141 = vld [vmem:[%s0 + $0x378] sm:$0xff]
  %143 = vset.pattern.permute.xlu0 0
  %144 = vperm.xlu0 %143, %v22
  %v145 = vpop.permute.xlu0 %144
  %148 = vset.pattern.permute.xlu0 0
  %149 = vperm.xlu0 %148, %v23
  %v150 = vpop.permute.xlu0 %149
  %153 = vset.pattern.permute.xlu0 0
  %154 = vperm.xlu0 %153, %v24
  %v155 = vpop.permute.xlu0 %154
  %158 = vset.pattern.permute.xlu0 0
  %159 = vperm.xlu0 %158, %v25
  %v160 = vpop.permute.xlu0 %159
  %163 = vset.pattern.permute.xlu0 0
  %164 = vperm.xlu0 %163, %v26
  %v165 = vpop.permute.xlu0 %164
  %168 = vset.pattern.permute.xlu0 0
  %169 = vperm.xlu0 %168, %v27
  %v170 = vpop.permute.xlu0 %169
  %173 = vset.pattern.permute.xlu0 0
  %174 = vperm.xlu0 %173, %v28
  %v175 = vpop.permute.xlu0 %174
  %178 = vset.pattern.permute.xlu0 0
  %179 = vperm.xlu0 %178, %v29
  %v180 = vpop.permute.xlu0 %179
  %182 = vmatprep.subr.mxu0 %v31
  %183 = vmatpush1.msra.mxu0 %v30
  %184 = vmatprep.subr.mxu0 %v38
  %185 = vmatpush1.msra.mxu0 %v37
  %186 = vmatprep.subr.mxu0 %v45
  %187 = vmatpush1.msra.mxu0 %v44
  %188 = vmatprep.subr.mxu0 %v52
  %189 = vmatpush1.msra.mxu0 %v51
  %190 = vmatprep.subr.mxu0 %v59
  %191 = vmatpush1.msra.mxu0 %v58
  %192 = vmatprep.subr.mxu0 %v66
  %193 = vmatpush1.msra.mxu0 %v65
  %194 = vmatprep.subr.mxu0 %v73
  %195 = vmatpush1.msra.mxu0 %v72
  %196 = vmatprep.subr.mxu0 %v80
  %197 = vmatpush1.msra.mxu0 %v79
  %198 = vmatprep.subr.mxu0 %v87
  %199 = vmatpush1.msra.mxu0 %v86
  %200 = vmatprep.subr.mxu0 %v94
  %201 = vmatpush1.msra.mxu0 %v93
  %202 = vmatprep.subr.mxu0 %v101
  %203 = vmatpush1.msra.mxu0 %v100
  %204 = vmatprep.subr.mxu0 %v108
  %205 = vmatpush1.msra.mxu0 %v107
  %206 = vmatprep.subr.mxu0 %v115
  %207 = vmatpush1.msra.mxu0 %v114
  %208 = vmatprep.subr.mxu0 %v122
  %209 = vmatpush1.msra.mxu0 %v121
  %210 = vmatprep.subr.mxu0 %v129
  %211 = vmatpush1.msra.mxu0 %v128
  %212 = vmatprep.subr.mxu0 %v136
  %213 = vmatpush1.msra.mxu0 %v135
  %214 = vmatprep.subr.mxu0 0.0
  %215 = vmatpush1.msra.mxu0 0.0
  %216 = vmatprep.subr.mxu0 0.0
  %217 = vmatpush1.msra.mxu0 0.0
  %218 = vmatprep.subr.mxu0 0.0
  %219 = vmatpush1.msra.mxu0 0.0
  %220 = vmatprep.subr.mxu0 0.0
  %221 = vmatpush1.msra.mxu0 0.0
  %222 = vmatprep.subr.mxu0 0.0
  %223 = vmatpush1.msra.mxu0 0.0
  %224 = vmatprep.subr.mxu0 0.0
  %225 = vmatpush1.msra.mxu0 0.0
  %226 = vmatprep.subr.mxu0 0.0
  %227 = vmatpush1.msra.mxu0 0.0
  %228 = vmatprep.subr.mxu0 0.0
  %229 = vmatpush1.msra.mxu0 0.0
  %230 = vmatprep.subr.mxu0 0.0
  %231 = vmatpush1.msra.mxu0 0.0
  %232 = vmatprep.subr.mxu0 0.0
  %233 = vmatpush1.msra.mxu0 0.0
  %234 = vmatprep.subr.mxu0 0.0
  %235 = vmatpush1.msra.mxu0 0.0
  %236 = vmatprep.subr.mxu0 0.0
  %237 = vmatpush1.msra.mxu0 0.0
  %238 = vmatprep.subr.mxu0 0.0
  %239 = vmatpush1.msra.mxu0 0.0
  %240 = vmatprep.subr.mxu0 0.0
  %241 = vmatpush1.msra.mxu0 0.0
  %242 = vmatprep.subr.mxu0 0.0
  %243 = vmatpush1.msra.mxu0 0.0
  %244 = vmatprep.subr.mxu0 0.0
  %245 = vmatpush1.msra.mxu0 0.0
  %246 = vmatprep.mubr.f32.mxu0 0.0
  %247 = vmatmul.mubr.f32.gmra.mrb[0].mxu0 %v14
  %v248 = vpop.f32.mrb[0].mxu0
  %v249 = vadd.f32 %v145, %v248
  %v250 = vpop.f32.mrb[0].mxu0
  %v251 = vadd.f32 %v145, %v250
  %252 = vmatprep.mubr.f32.mxu0 0.0
  %253 = vmatmul.mubr.f32.gmra.mrb[0].mxu0 %v15
  %v254 = vpop.f32.mrb[0].mxu0
  %v255 = vadd.f32 %v150, %v254
  %v256 = vpop.f32.mrb[0].mxu0
  %v257 = vadd.f32 %v150, %v256
  %258 = vmatprep.mubr.f32.mxu0 0.0
  %259 = vmatmul.mubr.f32.gmra.mrb[0].mxu0 %v16
  %v260 = vpop.f32.mrb[0].mxu0
  %v261 = vadd.f32 %v155, %v260
  %v262 = vpop.f32.mrb[0].mxu0
  %v263 = vadd.f32 %v155, %v262
  %264 = vmatprep.mubr.f32.mxu0 0.0
  %265 = vmatmul.mubr.f32.gmra.mrb[0].mxu0 %v17
  %v266 = vpop.f32.mrb[0].mxu0
  %v267 = vadd.f32 %v160, %v266
  %v268 = vpop.f32.mrb[0].mxu0
  %v269 = vadd.f32 %v160, %v268
  %270 = vmatprep.mubr.f32.mxu0 0.0
  %271 = vmatmul.mubr.f32.gmra.mrb[0].mxu0 %v18
  %v272 = vpop.f32.mrb[0].mxu0
  %v273 = vadd.f32 %v165, %v272
  %v274 = vpop.f32.mrb[0].mxu0
  %v275 = vadd.f32 %v165, %v274
  %276 = vmatprep.mubr.f32.mxu0 0.0
  %277 = vmatmul.mubr.f32.gmra.mrb[0].mxu0 %v19
  %v278 = vpop.f32.mrb[0].mxu0
  %v279 = vadd.f32 %v170, %v278
  %v280 = vpop.f32.mrb[0].mxu0
  %v281 = vadd.f32 %v170, %v280
  %282 = vmatprep.mubr.f32.mxu0 0.0
  %283 = vmatmul.mubr.f32.gmra.mrb[0].mxu0 %v20
  %v284 = vpop.f32.mrb[0].mxu0
  %v285 = vadd.f32 %v175, %v284
  %v286 = vpop.f32.mrb[0].mxu0
  %v287 = vadd.f32 %v175, %v286
  %288 = vmatprep.mubr.f32.mxu0 0.0
  %289 = vmatmul.mubr.f32.gmra.mrb[0].mxu0 %v21
  %v290 = vpop.f32.mrb[0].mxu0
  %v291 = vadd.f32 %v180, %v290
  %v292 = vpop.f32.mrb[0].mxu0
  %v293 = vadd.f32 %v180, %v292
  %294 = vdwg.mxu0
  %295 = vmatprep.subr.mxu0 %v33
  %296 = vmatpush1.msra.mxu0 %v32
  %297 = vmatprep.subr.mxu0 %v40
  %298 = vmatpush1.msra.mxu0 %v39
  %299 = vmatprep.subr.mxu0 %v47
  %300 = vmatpush1.msra.mxu0 %v46
  %301 = vmatprep.subr.mxu0 %v54
  %302 = vmatpush1.msra.mxu0 %v53
  %303 = vmatprep.subr.mxu0 %v61
  %304 = vmatpush1.msra.mxu0 %v60
  %305 = vmatprep.subr.mxu0 %v68
  %306 = vmatpush1.msra.mxu0 %v67
  %307 = vmatprep.subr.mxu0 %v75
  %308 = vmatpush1.msra.mxu0 %v74
  %309 = vmatprep.subr.mxu0 %v82
  %310 = vmatpush1.msra.mxu0 %v81
  %311 = vmatprep.subr.mxu0 %v89
  %312 = vmatpush1.msra.mxu0 %v88
  %313 = vmatprep.subr.mxu0 %v96
  %314 = vmatpush1.msra.mxu0 %v95
  %315 = vmatprep.subr.mxu0 %v103
  %316 = vmatpush1.msra.mxu0 %v102
  %317 = vmatprep.subr.mxu0 %v110
  %318 = vmatpush1.msra.mxu0 %v109
  %319 = vmatprep.subr.mxu0 %v117
  %320 = vmatpush1.msra.mxu0 %v116
  %321 = vmatprep.subr.mxu0 %v124
  %322 = vmatpush1.msra.mxu0 %v123
  %323 = vmatprep.subr.mxu0 %v131
  %324 = vmatpush1.msra.mxu0 %v130
  %325 = vmatprep.subr.mxu0 %v138
  %326 = vmatpush1.msra.mxu0 %v137
  %327 = vmatprep.subr.mxu0 0.0
  %328 = vmatpush1.msra.mxu0 0.0
  %329 = vmatprep.subr.mxu0 0.0
  %330 = vmatpush1.msra.mxu0 0.0
  %331 = vmatprep.subr.mxu0 0.0
  %332 = vmatpush1.msra.mxu0 0.0
  %333 = vmatprep.subr.mxu0 0.0
  %334 = vmatpush1.msra.mxu0 0.0
  %335 = vmatprep.subr.mxu0 0.0
  %336 = vmatpush1.msra.mxu0 0.0
  %337 = vmatprep.subr.mxu0 0.0
  %338 = vmatpush1.msra.mxu0 0.0
  %339 = vmatprep.subr.mxu0 0.0
  %340 = vmatpush1.msra.mxu0 0.0
  %341 = vmatprep.subr.mxu0 0.0
  %342 = vmatpush1.msra.mxu0 0.0
  %343 = vmatprep.subr.mxu0 0.0
  %344 = vmatpush1.msra.mxu0 0.0
  %345 = vmatprep.subr.mxu0 0.0
  %346 = vmatpush1.msra.mxu0 0.0
  %347 = vmatprep.subr.mxu0 0.0
  %348 = vmatpush1.msra.mxu0 0.0
  %349 = vmatprep.subr.mxu0 0.0
  %350 = vmatpush1.msra.mxu0 0.0
  %351 = vmatprep.subr.mxu0 0.0
  %352 = vmatpush1.msra.mxu0 0.0
  %353 = vmatprep.subr.mxu0 0.0
  %354 = vmatpush1.msra.mxu0 0.0
  %355 = vmatprep.subr.mxu0 0.0
  %356 = vmatpush1.msra.mxu0 0.0
  %357 = vmatprep.subr.mxu0 0.0
  %358 = vmatpush1.msra.mxu0 0.0
  %359 = vmatprep.mubr.f32.mxu0 0.0
  %360 = vmatmul.mubr.f32.gmra.mrb[0].mxu0 %v14
  %v361 = vpop.f32.mrb[0].mxu0
  %v362 = vadd.f32 %v145, %v361
  %v363 = vpop.f32.mrb[0].mxu0
  %v364 = vadd.f32 %v145, %v363
  %365 = vmatprep.mubr.f32.mxu0 0.0
  %366 = vmatmul.mubr.f32.gmra.mrb[0].mxu0 %v15
  %v367 = vpop.f32.mrb[0].mxu0
  %v368 = vadd.f32 %v150, %v367
  %v369 = vpop.f32.mrb[0].mxu0
  %v370 = vadd.f32 %v150, %v369
  %371 = vmatprep.mubr.f32.mxu0 0.0
  %372 = vmatmul.mubr.f32.gmra.mrb[0].mxu0 %v16
  %v373 = vpop.f32.mrb[0].mxu0
  %v374 = vadd.f32 %v155, %v373
  %v375 = vpop.f32.mrb[0].mxu0
  %v376 = vadd.f32 %v155, %v375
  %377 = vmatprep.mubr.f32.mxu0 0.0
  %378 = vmatmul.mubr.f32.gmra.mrb[0].mxu0 %v17
  %v379 = vpop.f32.mrb[0].mxu0
  %v380 = vadd.f32 %v160, %v379
  %v381 = vpop.f32.mrb[0].mxu0
  %v382 = vadd.f32 %v160, %v381
  %383 = vmatprep.mubr.f32.mxu0 0.0
  %384 = vmatmul.mubr.f32.gmra.mrb[0].mxu0 %v18
  %v385 = vpop.f32.mrb[0].mxu0
  %v386 = vadd.f32 %v165, %v385
  %v387 = vpop.f32.mrb[0].mxu0
  %v388 = vadd.f32 %v165, %v387
  %389 = vmatprep.mubr.f32.mxu0 0.0
  %390 = vmatmul.mubr.f32.gmra.mrb[0].mxu0 %v19
  %v391 = vpop.f32.mrb[0].mxu0
  %v392 = vadd.f32 %v170, %v391
  %v393 = vpop.f32.mrb[0].mxu0
  %v394 = vadd.f32 %v170, %v393
  %395 = vmatprep.mubr.f32.mxu0 0.0
  %396 = vmatmul.mubr.f32.gmra.mrb[0].mxu0 %v20
  %v397 = vpop.f32.mrb[0].mxu0
  %v398 = vadd.f32 %v175, %v397
  %v399 = vpop.f32.mrb[0].mxu0
  %v400 = vadd.f32 %v175, %v399
  %401 = vmatprep.mubr.f32.mxu0 0.0
  %402 = vmatmul.mubr.f32.gmra.mrb[0].mxu0 %v21
  %v403 = vpop.f32.mrb[0].mxu0
  %v404 = vadd.f32 %v180, %v403
  %v405 = vpop.f32.mrb[0].mxu0
  %v406 = vadd.f32 %v180, %v405
  %407 = vdwg.mxu0
  %408 = vmatprep.subr.mxu0 %v35
  %409 = vmatpush1.msra.mxu0 %v34
  %410 = vmatprep.subr.mxu0 %v42
  %411 = vmatpush1.msra.mxu0 %v41
  %412 = vmatprep.subr.mxu0 %v49
  %413 = vmatpush1.msra.mxu0 %v48
  %414 = vmatprep.subr.mxu0 %v56
  %415 = vmatpush1.msra.mxu0 %v55
  %416 = vmatprep.subr.mxu0 %v63
  %417 = vmatpush1.msra.mxu0 %v62
  %418 = vmatprep.subr.mxu0 %v70
  %419 = vmatpush1.msra.mxu0 %v69
  %420 = vmatprep.subr.mxu0 %v77
  %421 = vmatpush1.msra.mxu0 %v76
  %422 = vmatprep.subr.mxu0 %v84
  %423 = vmatpush1.msra.mxu0 %v83
  %424 = vmatprep.subr.mxu0 %v91
  %425 = vmatpush1.msra.mxu0 %v90
  %426 = vmatprep.subr.mxu0 %v98
  %427 = vmatpush1.msra.mxu0 %v97
  %428 = vmatprep.subr.mxu0 %v105
  %429 = vmatpush1.msra.mxu0 %v104
  %430 = vmatprep.subr.mxu0 %v112
  %431 = vmatpush1.msra.mxu0 %v111
  %432 = vmatprep.subr.mxu0 %v119
  %433 = vmatpush1.msra.mxu0 %v118
  %434 = vmatprep.subr.mxu0 %v126
  %435 = vmatpush1.msra.mxu0 %v125
  %436 = vmatprep.subr.mxu0 %v133
  %437 = vmatpush1.msra.mxu0 %v132
  %438 = vmatprep.subr.mxu0 %v140
  %439 = vmatpush1.msra.mxu0 %v139
  %440 = vmatprep.subr.mxu0 0.0
  %441 = vmatpush1.msra.mxu0 0.0
  %442 = vmatprep.subr.mxu0 0.0
  %443 = vmatpush1.msra.mxu0 0.0
  %444 = vmatprep.subr.mxu0 0.0
  %445 = vmatpush1.msra.mxu0 0.0
  %446 = vmatprep.subr.mxu0 0.0
  %447 = vmatpush1.msra.mxu0 0.0
  %448 = vmatprep.subr.mxu0 0.0
  %449 = vmatpush1.msra.mxu0 0.0
  %450 = vmatprep.subr.mxu0 0.0
  %451 = vmatpush1.msra.mxu0 0.0
  %452 = vmatprep.subr.mxu0 0.0
  %453 = vmatpush1.msra.mxu0 0.0
  %454 = vmatprep.subr.mxu0 0.0
  %455 = vmatpush1.msra.mxu0 0.0
  %456 = vmatprep.subr.mxu0 0.0
  %457 = vmatpush1.msra.mxu0 0.0
  %458 = vmatprep.subr.mxu0 0.0
  %459 = vmatpush1.msra.mxu0 0.0
  %460 = vmatprep.subr.mxu0 0.0
  %461 = vmatpush1.msra.mxu0 0.0
  %462 = vmatprep.subr.mxu0 0.0
  %463 = vmatpush1.msra.mxu0 0.0
  %464 = vmatprep.subr.mxu0 0.0
  %465 = vmatpush1.msra.mxu0 0.0
  %466 = vmatprep.subr.mxu0 0.0
  %467 = vmatpush1.msra.mxu0 0.0
  %468 = vmatprep.subr.mxu0 0.0
  %469 = vmatpush1.msra.mxu0 0.0
  %470 = vmatprep.subr.mxu0 0.0
  %471 = vmatpush1.msra.mxu0 0.0
  %472 = vmatprep.mubr.f32.mxu0 0.0
  %473 = vmatmul.mubr.f32.gmra.mrb[0].mxu0 %v14
  %v474 = vpop.f32.mrb[0].mxu0
  %v475 = vadd.f32 %v145, %v474
  %v476 = vpop.f32.mrb[0].mxu0
  %v477 = vadd.f32 %v145, %v476
  %478 = vmatprep.mubr.f32.mxu0 0.0
  %479 = vmatmul.mubr.f32.gmra.mrb[0].mxu0 %v15
  %v480 = vpop.f32.mrb[0].mxu0
  %v481 = vadd.f32 %v150, %v480
  %v482 = vpop.f32.mrb[0].mxu0
  %v483 = vadd.f32 %v150, %v482
  %484 = vmatprep.mubr.f32.mxu0 0.0
  %485 = vmatmul.mubr.f32.gmra.mrb[0].mxu0 %v16
  %v486 = vpop.f32.mrb[0].mxu0
  %v487 = vadd.f32 %v155, %v486
  %v488 = vpop.f32.mrb[0].mxu0
  %v489 = vadd.f32 %v155, %v488
  %490 = vmatprep.mubr.f32.mxu0 0.0
  %491 = vmatmul.mubr.f32.gmra.mrb[0].mxu0 %v17
  %v492 = vpop.f32.mrb[0].mxu0
  %v493 = vadd.f32 %v160, %v492
  %v494 = vpop.f32.mrb[0].mxu0
  %v495 = vadd.f32 %v160, %v494
  %496 = vmatprep.mubr.f32.mxu0 0.0
  %497 = vmatmul.mubr.f32.gmra.mrb[0].mxu0 %v18
  %v498 = vpop.f32.mrb[0].mxu0
  %v499 = vadd.f32 %v165, %v498
  %v500 = vpop.f32.mrb[0].mxu0
  %v501 = vadd.f32 %v165, %v500
  %502 = vmatprep.mubr.f32.mxu0 0.0
  %503 = vmatmul.mubr.f32.gmra.mrb[0].mxu0 %v19
  %v504 = vpop.f32.mrb[0].mxu0
  %v505 = vadd.f32 %v170, %v504
  %v506 = vpop.f32.mrb[0].mxu0
  %v507 = vadd.f32 %v170, %v506
  %508 = vmatprep.mubr.f32.mxu0 0.0
  %509 = vmatmul.mubr.f32.gmra.mrb[0].mxu0 %v20
  %v510 = vpop.f32.mrb[0].mxu0
  %v511 = vadd.f32 %v175, %v510
  %v512 = vpop.f32.mrb[0].mxu0
  %v513 = vadd.f32 %v175, %v512
  %514 = vmatprep.mubr.f32.mxu0 0.0
  %515 = vmatmul.mubr.f32.gmra.mrb[0].mxu0 %v21
  %v516 = vpop.f32.mrb[0].mxu0
  %v517 = vadd.f32 %v180, %v516
  %v518 = vpop.f32.mrb[0].mxu0
  %v519 = vadd.f32 %v180, %v518
  %520 = vdwg.mxu0
  %521 = vmatprep.subr.mxu0 0.0
  %522 = vmatpush1.msra.mxu0 %v36
  %523 = vmatprep.subr.mxu0 0.0
  %524 = vmatpush1.msra.mxu0 %v43
  %525 = vmatprep.subr.mxu0 0.0
  %526 = vmatpush1.msra.mxu0 %v50
  %527 = vmatprep.subr.mxu0 0.0
  %528 = vmatpush1.msra.mxu0 %v57
  %529 = vmatprep.subr.mxu0 0.0
  %530 = vmatpush1.msra.mxu0 %v64
  %531 = vmatprep.subr.mxu0 0.0
  %532 = vmatpush1.msra.mxu0 %v71
  %533 = vmatprep.subr.mxu0 0.0
  %534 = vmatpush1.msra.mxu0 %v78
  %535 = vmatprep.subr.mxu0 0.0
  %536 = vmatpush1.msra.mxu0 %v85
  %537 = vmatprep.subr.mxu0 0.0
  %538 = vmatpush1.msra.mxu0 %v92
  %539 = vmatprep.subr.mxu0 0.0
  %540 = vmatpush1.msra.mxu0 %v99
  %541 = vmatprep.subr.mxu0 0.0
  %542 = vmatpush1.msra.mxu0 %v106
  %543 = vmatprep.subr.mxu0 0.0
  %544 = vmatpush1.msra.mxu0 %v113
  %545 = vmatprep.subr.mxu0 0.0
  %546 = vmatpush1.msra.mxu0 %v120
  %547 = vmatprep.subr.mxu0 0.0
  %548 = vmatpush1.msra.mxu0 %v127
  %549 = vmatprep.subr.mxu0 0.0
  %550 = vmatpush1.msra.mxu0 %v134
  %551 = vmatprep.subr.mxu0 0.0
  %552 = vmatpush1.msra.mxu0 %v141
  %553 = vmatprep.subr.mxu0 0.0
  %554 = vmatpush1.msra.mxu0 0.0
  %555 = vmatprep.subr.mxu0 0.0
  %556 = vmatpush1.msra.mxu0 0.0
  %557 = vmatprep.subr.mxu0 0.0
  %558 = vmatpush1.msra.mxu0 0.0
  %559 = vmatprep.subr.mxu0 0.0
  %560 = vmatpush1.msra.mxu0 0.0
  %561 = vmatprep.subr.mxu0 0.0
  %562 = vmatpush1.msra.mxu0 0.0
  %563 = vmatprep.subr.mxu0 0.0
  %564 = vmatpush1.msra.mxu0 0.0
  %565 = vmatprep.subr.mxu0 0.0
  %566 = vmatpush1.msra.mxu0 0.0
  %567 = vmatprep.subr.mxu0 0.0
  %568 = vmatpush1.msra.mxu0 0.0
  %569 = vmatprep.subr.mxu0 0.0
  %570 = vmatpush1.msra.mxu0 0.0
  %571 = vmatprep.subr.mxu0 0.0
  %572 = vmatpush1.msra.mxu0 0.0
  %573 = vmatprep.subr.mxu0 0.0
  %574 = vmatpush1.msra.mxu0 0.0
  %575 = vmatprep.subr.mxu0 0.0
  %576 = vmatpush1.msra.mxu0 0.0
  %577 = vmatprep.subr.mxu0 0.0
  %578 = vmatpush1.msra.mxu0 0.0
  %579 = vmatprep.subr.mxu0 0.0
  %580 = vmatpush1.msra.mxu0 0.0
  %581 = vmatprep.subr.mxu0 0.0
  %582 = vmatpush1.msra.mxu0 0.0
  %583 = vmatprep.subr.mxu0 0.0
  %584 = vmatpush1.msra.mxu0 0.0
  %585 = vmatprep.mubr.f32.mxu0 0.0
  %586 = vmatmul.mubr.f32.gmra.mrb[0].mxu0 %v14
  %v587 = vpop.f32.mrb[0].mxu0
  %v588 = vadd.f32 %v145, %v587
  %v589 = vpop.f32.mrb[0].mxu0
  %590 = vmatprep.mubr.f32.mxu0 0.0
  %591 = vmatmul.mubr.f32.gmra.mrb[0].mxu0 %v15
  %v592 = vpop.f32.mrb[0].mxu0
  %v593 = vadd.f32 %v150, %v592
  %v594 = vpop.f32.mrb[0].mxu0
  %595 = vmatprep.mubr.f32.mxu0 0.0
  %596 = vmatmul.mubr.f32.gmra.mrb[0].mxu0 %v16
  %v597 = vpop.f32.mrb[0].mxu0
  %v598 = vadd.f32 %v155, %v597
  %v599 = vpop.f32.mrb[0].mxu0
  %600 = vmatprep.mubr.f32.mxu0 0.0
  %601 = vmatmul.mubr.f32.gmra.mrb[0].mxu0 %v17
  %v602 = vpop.f32.mrb[0].mxu0
  %v603 = vadd.f32 %v160, %v602
  %v604 = vpop.f32.mrb[0].mxu0
  %605 = vmatprep.mubr.f32.mxu0 0.0
  %606 = vmatmul.mubr.f32.gmra.mrb[0].mxu0 %v18
  %v607 = vpop.f32.mrb[0].mxu0
  %v608 = vadd.f32 %v165, %v607
  %v609 = vpop.f32.mrb[0].mxu0
  %610 = vmatprep.mubr.f32.mxu0 0.0
  %611 = vmatmul.mubr.f32.gmra.mrb[0].mxu0 %v19
  %v612 = vpop.f32.mrb[0].mxu0
  %v613 = vadd.f32 %v170, %v612
  %v614 = vpop.f32.mrb[0].mxu0
  %615 = vmatprep.mubr.f32.mxu0 0.0
  %616 = vmatmul.mubr.f32.gmra.mrb[0].mxu0 %v20
  %v617 = vpop.f32.mrb[0].mxu0
  %v618 = vadd.f32 %v175, %v617
  %v619 = vpop.f32.mrb[0].mxu0
  %620 = vmatprep.mubr.f32.mxu0 0.0
  %621 = vmatmul.mubr.f32.gmra.mrb[0].mxu0 %v21
  %v622 = vpop.f32.mrb[0].mxu0
  %v623 = vadd.f32 %v180, %v622
  %v624 = vpop.f32.mrb[0].mxu0
  %625 = vdwg.mxu0
  %v626 = vtanh.pop %v249
  %v627 = vtanh.pop %v251
  %v628 = vtanh.pop %v362
  %v629 = vtanh.pop %v364
  %v630 = vtanh.pop %v475
  %v631 = vtanh.pop %v477
  %v632 = vtanh.pop %v588
  %v633 = vtanh.pop %v255
  %v634 = vtanh.pop %v257
  %v635 = vtanh.pop %v368
  %v636 = vtanh.pop %v370
  %v637 = vtanh.pop %v481
  %v638 = vtanh.pop %v483
  %v639 = vtanh.pop %v593
  %v640 = vtanh.pop %v261
  %v641 = vtanh.pop %v263
  %v642 = vtanh.pop %v374
  %v643 = vtanh.pop %v376
  %v644 = vtanh.pop %v487
  %v645 = vtanh.pop %v489
  %v646 = vtanh.pop %v598
  %v647 = vtanh.pop %v267
  %v648 = vtanh.pop %v269
  %v649 = vtanh.pop %v380
  %v650 = vtanh.pop %v382
  %v651 = vtanh.pop %v493
  %v652 = vtanh.pop %v495
  %v653 = vtanh.pop %v603
  %v654 = vtanh.pop %v273
  %v655 = vtanh.pop %v275
  %v656 = vtanh.pop %v386
  %v657 = vtanh.pop %v388
  %v658 = vtanh.pop %v499
  %v659 = vtanh.pop %v501
  %v660 = vtanh.pop %v608
  %v661 = vtanh.pop %v279
  %v662 = vtanh.pop %v281
  %v663 = vtanh.pop %v392
  %v664 = vtanh.pop %v394
  %v665 = vtanh.pop %v505
  %v666 = vtanh.pop %v507
  %v667 = vtanh.pop %v613
  %v668 = vtanh.pop %v285
  %v669 = vtanh.pop %v287
  %v670 = vtanh.pop %v398
  %v671 = vtanh.pop %v400
  %v672 = vtanh.pop %v511
  %v673 = vtanh.pop %v513
  %v674 = vtanh.pop %v618
  %v675 = vtanh.pop %v291
  %v676 = vtanh.pop %v293
  %v677 = vtanh.pop %v404
  %v678 = vtanh.pop %v406
  %v679 = vtanh.pop %v517
  %v680 = vtanh.pop %v519
  %v681 = vtanh.pop %v623
  %682 = vst [vmem:[%s3] sm:$0xff] %v626
  %683 = vst [vmem:[%s3 + $0x8] sm:$0xff] %v627
  %684 = vst [vmem:[%s3 + $0x10] sm:$0xff] %v628
  %685 = vst [vmem:[%s3 + $0x18] sm:$0xff] %v629
  %686 = vst [vmem:[%s3 + $0x20] sm:$0xff] %v630
  %687 = vst [vmem:[%s3 + $0x28] sm:$0xff] %v631
  %vm688 = vcmask 130048
  %689 = vst.msk [vmem:[%s3 + $0x30] sm:$0xff] %vm688, %v632
  %690 = vst [vmem:[%s3 + $0x38] sm:$0xff] %v633
  %691 = vst [vmem:[%s3 + $0x40] sm:$0xff] %v634
  %692 = vst [vmem:[%s3 + $0x48] sm:$0xff] %v635
  %693 = vst [vmem:[%s3 + $0x50] sm:$0xff] %v636
  %694 = vst [vmem:[%s3 + $0x58] sm:$0xff] %v637
  %695 = vst [vmem:[%s3 + $0x60] sm:$0xff] %v638
  %696 = vst.msk [vmem:[%s3 + $0x68] sm:$0xff] %vm688, %v639
  %697 = vst [vmem:[%s3 + $0x70] sm:$0xff] %v640
  %698 = vst [vmem:[%s3 + $0x78] sm:$0xff] %v641
  %699 = vst [vmem:[%s3 + $0x80] sm:$0xff] %v642
  %700 = vst [vmem:[%s3 + $0x88] sm:$0xff] %v643
  %701 = vst [vmem:[%s3 + $0x90] sm:$0xff] %v644
  %702 = vst [vmem:[%s3 + $0x98] sm:$0xff] %v645
  %703 = vst.msk [vmem:[%s3 + $0xa0] sm:$0xff] %vm688, %v646
  %704 = vst [vmem:[%s3 + $0xa8] sm:$0xff] %v647
  %705 = vst [vmem:[%s3 + $0xb0] sm:$0xff] %v648
  %706 = vst [vmem:[%s3 + $0xb8] sm:$0xff] %v649
  %707 = vst [vmem:[%s3 + $0xc0] sm:$0xff] %v650
  %708 = vst [vmem:[%s3 + $0xc8] sm:$0xff] %v651
  %709 = vst [vmem:[%s3 + $0xd0] sm:$0xff] %v652
  %710 = vst.msk [vmem:[%s3 + $0xd8] sm:$0xff] %vm688, %v653
  %711 = vst [vmem:[%s3 + $0xe0] sm:$0xff] %v654
  %712 = vst [vmem:[%s3 + $0xe8] sm:$0xff] %v655
  %713 = vst [vmem:[%s3 + $0xf0] sm:$0xff] %v656
  %714 = vst [vmem:[%s3 + $0xf8] sm:$0xff] %v657
  %715 = vst [vmem:[%s3 + $0x100] sm:$0xff] %v658
  %716 = vst [vmem:[%s3 + $0x108] sm:$0xff] %v659
  %717 = vst.msk [vmem:[%s3 + $0x110] sm:$0xff] %vm688, %v660
  %718 = vst [vmem:[%s3 + $0x118] sm:$0xff] %v661
  %719 = vst [vmem:[%s3 + $0x120] sm:$0xff] %v662
  %720 = vst [vmem:[%s3 + $0x128] sm:$0xff] %v663
  %721 = vst [vmem:[%s3 + $0x130] sm:$0xff] %v664
  %722 = vst [vmem:[%s3 + $0x138] sm:$0xff] %v665
  %723 = vst [vmem:[%s3 + $0x140] sm:$0xff] %v666
  %724 = vst.msk [vmem:[%s3 + $0x148] sm:$0xff] %vm688, %v667
  %725 = vst [vmem:[%s3 + $0x150] sm:$0xff] %v668
  %726 = vst [vmem:[%s3 + $0x158] sm:$0xff] %v669
  %727 = vst [vmem:[%s3 + $0x160] sm:$0xff] %v670
  %728 = vst [vmem:[%s3 + $0x168] sm:$0xff] %v671
  %729 = vst [vmem:[%s3 + $0x170] sm:$0xff] %v672
  %730 = vst [vmem:[%s3 + $0x178] sm:$0xff] %v673
  %731 = vst.msk [vmem:[%s3 + $0x180] sm:$0xff] %vm688, %v674
  %732 = vst [vmem:[%s3 + $0x188] sm:$0xff] %v675
  %733 = vst [vmem:[%s3 + $0x190] sm:$0xff] %v676
  %734 = vst [vmem:[%s3 + $0x198] sm:$0xff] %v677
  %735 = vst [vmem:[%s3 + $0x1a0] sm:$0xff] %v678
  %736 = vst [vmem:[%s3 + $0x1a8] sm:$0xff] %v679
  %737 = vst [vmem:[%s3 + $0x1b0] sm:$0xff] %v680
  %738 = vst.msk [vmem:[%s3 + $0x1b8] sm:$0xff] %vm688, %v681
  // Predicated region
  $region14: #{model_tanh_forward_fused.1} parent=0 // pred_check
    _
  $region15: #{model_tanh_forward_fused.1} parent=0 // pred_check_branch
    %740 = sbr.rel (0) target = $region17
  $region16: #{model_tanh_forward_fused.1} parent=0 // pred_region
    _
  $region17: #{model_tanh_forward_fused.1} parent=0 // pred_fallthru
    _
  // Predicated region
  $region18: #{model_tanh_forward_fused.1} parent=0 // pred_check
    _
  $region19: #{model_tanh_forward_fused.1} parent=0 // pred_check_branch
    %742 = sbr.rel (0) target = $region21
  $region20: #{model_tanh_forward_fused.1} parent=0 // pred_region
    _
  $region21: #{model_tanh_forward_fused.1} parent=0 // pred_fallthru
    _

</llo_original>
